<compile_context>
chip_gen: v5e
topology: v5e:2x2
jax: 0.10.0
libtpu: 0.0.40
codegen_flags: <defaults>
</compile_context>

<pallas_src>
import jax
import jax.numpy as jnp
from jax.experimental import pallas as pl
from jax.experimental.pallas import tpu as pltpu


# ---------------------------------------------------------------------------
# Kernel
# ---------------------------------------------------------------------------
def _blstats_encoder_kernel(x_ref, w_ref, b_ref, o_ref):
    # One batch tile: (TILE_B, K) @ (K, H) + (1, H) -> relu -> (TILE_B, H)
    x = x_ref[...]
    if x.dtype != jnp.float32:            # matches PyTorch's x.float()
        x = x.astype(jnp.float32)
    h = jnp.dot(x, w_ref[...], preferred_element_type=jnp.float32) + b_ref[...]
    o_ref[...] = jnp.maximum(h, 0.0).astype(o_ref.dtype)


# ---------------------------------------------------------------------------
# Tile-size selection (VMEM-budgeted)
# ---------------------------------------------------------------------------
_VMEM_BUFFER_BUDGET = 32 * 1024 * 1024   # double-buffered tile budget (safe on v7x)
_VMEM_LIMIT_BYTES = 48 * 1024 * 1024     # <=48 MiB: OK on v7x, ample on v5e/v6e
_MIN_SPLIT_ROWS = 1024                   # keep >=2 grid steps once B >= 2*this


def _round_up(v, m):
    return ((v + m - 1) // m) * m


def _pick_tile_b(B, K, H, x_itemsize, out_itemsize, tile_b_max):
    # Per-row VMEM bytes, double-buffered. x lane-pads K up to >=128 lanes in VMEM.
    x_row = max(128, _round_up(K, 128)) * max(int(x_itemsize), 1)
    o_row = H * int(out_itemsize)
    per_row = 2 * (x_row + o_row)
    # Weights + bias (double-buffered by the default pipeliner even though constant).
    w_bytes = 2 * (_round_up(K, 8) * H + H) * 4
    budget = max(_VMEM_BUFFER_BUDGET - w_bytes, 8 * per_row)

    tile = budget // per_row
    tile = min(int(tile), int(tile_b_max), _round_up(B, 8))
    tile = max(8, (tile // 8) * 8)

    # Keep at least two grid steps when B is large enough that halving the tile still
    # leaves MiB-scale output tiles -> both v7x TensorCores get work (megacore).
    if B >= 2 * _MIN_SPLIT_ROWS and -(-B // tile) < 2:
        tile = _round_up(-(-B // 2), 8)
    return tile


# ---------------------------------------------------------------------------
# Wrapper
# ---------------------------------------------------------------------------
def blstats_encoder(x, w, b, *, tile_b_max=4096, out_dtype=jnp.float32,
                    min_kernel_batch=512):
    """relu(x.float() @ w + b).  x: (..., K); w: (K, H); b: (H,)."""
    K = x.shape[-1]
    Kw, H = w.shape
    assert K == Kw and b.shape == (H,)

    lead = x.shape[:-1]
    x2 = x.reshape(-1, K)                 # flatten leading dims; never upcast here
    B = x2.shape[0]

    def finish(y):
        return y.reshape(*lead, H)

    # Small-batch fast path: launch + pipeline prologue dominate; XLA's fused matmul
    # epilogue is at least as fast for a few-KiB problem.
    if B < min_kernel_batch:
        y = jnp.maximum(jnp.dot(x2.astype(jnp.float32), w) + b, 0.0)
        return finish(y.astype(out_dtype))

    tile_b = _pick_tile_b(B, K, H, x2.dtype.itemsize,
                          jnp.dtype(out_dtype).itemsize, tile_b_max)
    grid = (pl.cdiv(B, tile_b),)
    b2d = b.reshape(1, H).astype(jnp.float32)   # broadcasts over batch sublanes

    out = pl.pallas_call(
        _blstats_encoder_kernel,
        out_shape=jax.ShapeDtypeStruct((B, H), out_dtype),
        grid_spec=pltpu.PrefetchScalarGridSpec(
            num_scalar_prefetch=0,
            grid=grid,
            in_specs=[
                # x: tiled over batch -> double-buffered DMA overlaps compute.
                pl.BlockSpec((tile_b, K), lambda i: (i, 0)),
                # Weights / bias: constant index_map -> fetched once, VMEM-resident.
                pl.BlockSpec((K, H), lambda i: (0, 0)),
                pl.BlockSpec((1, H), lambda i: (0, 0)),
            ],
            # Lane-dense stores when H is a multiple of 128; partial boundary block's
            # writeback is clipped to B rows (no pad / slice round trips needed).
            out_specs=pl.BlockSpec((tile_b, H), lambda i: (i, 0)),
        ),
        compiler_params=pltpu.CompilerParams(
            dimension_semantics=("parallel",),       # shard batch tiles across TCs
            vmem_limit_bytes=_VMEM_LIMIT_BYTES,
        ),
    )(x2, w, b2d)

    return finish(out)


# ---------------------------------------------------------------------------
# Self-test
# ---------------------------------------------------------------------------
def _reference(x, w, b):
    return jnp.maximum(x.astype(jnp.float32) @ w + b, 0.0)


if __name__ == "__main__":
    key = jax.random.PRNGKey(0)
    k_x, k_w, k_b = jax.random.split(key, 3)

    # NetHack-ish shapes: blstats vector of 27 stats, hidden width 128 (lane-dense).
    BLSTATS, H_DIM = 27, 128
    # Batch chosen non-divisible by 8 / tile so the partial boundary block (masked
    # writeback, no jnp.pad) and the >=2-step "parallel" grid are both exercised.
    B = 2317

    x = jax.random.normal(k_x, (B, BLSTATS), dtype=jnp.float32)
    w = jax.random.normal(k_w, (BLSTATS, H_DIM), dtype=jnp.float32) * (
        1.0 / jnp.sqrt(BLSTATS)
    )
    b = jax.random.normal(k_b, (H_DIM,), dtype=jnp.float32) * 0.01

    ref = _reference(x, w, b)

    # Pallas kernel path.
    out = jax.block_until_ready(blstats_encoder(x, w, b))
    assert out.shape == (B, H_DIM)
    assert out.dtype == jnp.float32
    assert jnp.allclose(out, ref, atol=1e-4, rtol=1e-4)

    # Small-batch fast path stays numerically identical.
    out_small = jax.block_until_ready(blstats_encoder(x[:8], w, b))
    assert jnp.allclose(out_small, ref[:8], atol=1e-4, rtol=1e-4)

    print("KERNEL_OK")
</pallas_src>

<mosaic_0001>
module attributes {stable_mosaic.version = 11 : i64} {
  func.func @_blstats_encoder_kernel(%arg0: i32, %arg1: memref<1160x27xf32, #tpu.memory_space<vmem>>, %arg2: memref<27x128xf32, #tpu.memory_space<vmem>>, %arg3: memref<1x128xf32, #tpu.memory_space<vmem>>, %arg4: memref<1160x128xf32, #tpu.memory_space<vmem>>) attributes {dimension_semantics = [#tpu.dimension_semantics<parallel>], iteration_bounds = array<i64: 2>, scalar_prefetch = 0 : i64, scratch_operands = 0 : i64, tpu.core_type = #tpu.core_type<tc>, window_params = [{transform_indices = @transform_0, window_bounds = array<i64: 1160, 27>}, {pipeline_mode = #tpu.pipeline_mode<synchronous>, transform_indices = @transform_1, window_bounds = array<i64: 27, 128>}, {pipeline_mode = #tpu.pipeline_mode<synchronous>, transform_indices = @transform_2, window_bounds = array<i64: 1, 128>}, {transform_indices = @transform_3, window_bounds = array<i64: 1160, 128>}]} {
    %c0 = arith.constant 0 : index
    %c0_0 = arith.constant 0 : index
    %0 = vector.load %arg1[%c0, %c0_0] : memref<1160x27xf32, #tpu.memory_space<vmem>>, vector<1160x27xf32>
    %c0_1 = arith.constant 0 : index
    %c0_2 = arith.constant 0 : index
    %1 = vector.load %arg2[%c0_1, %c0_2] : memref<27x128xf32, #tpu.memory_space<vmem>>, vector<27x128xf32>
    %cst = arith.constant dense<0.000000e+00> : vector<1160x128xf32>
    %2 = tpu.matmul %0, %1, %cst {dimension_numbers = #tpu.dot_dimension_numbers<[1], [0], [0], [1], [0, 0, 1, 1], [], []>} : vector<1160x27xf32>, vector<27x128xf32>, vector<1160x128xf32> -> vector<1160x128xf32>
    %c0_3 = arith.constant 0 : index
    %c0_4 = arith.constant 0 : index
    %3 = vector.load %arg3[%c0_3, %c0_4] : memref<1x128xf32, #tpu.memory_space<vmem>>, vector<1x128xf32>
    %4 = vector.broadcast %3 : vector<1x128xf32> to vector<1160x128xf32>
    %5 = arith.addf %2, %4 : vector<1160x128xf32>
    %cst_5 = arith.constant 0.000000e+00 : f32
    %6 = vector.broadcast %cst_5 : f32 to vector<1160x128xf32>
    %7 = arith.maximumf %5, %6 : vector<1160x128xf32>
    %c0_6 = arith.constant 0 : index
    %c0_7 = arith.constant 0 : index
    %8 = vector.load %arg4[%c0_6, %c0_7] : memref<1160x128xf32, #tpu.memory_space<vmem>>, vector<1160x128xf32>
    tpu.vector_store %arg4[%c0_6, %c0_7], %7 {strides = array<i32>} : memref<1160x128xf32, #tpu.memory_space<vmem>>, vector<1160x128xf32>,
    return
  }
  func.func @transform_0(%arg0: i32) -> (i32, i32) {
    %c0_i32 = arith.constant 0 : i32
    %c0_i32_0 = arith.constant 0 : i32
    return %arg0, %c0_i32 : i32, i32
  }
  func.func @transform_1(%arg0: i32) -> (i32, i32) {
    %c0_i32 = arith.constant 0 : i32
    %c0_i32_0 = arith.constant 0 : i32
    %c0_i32_1 = arith.constant 0 : i32
    return %c0_i32, %c0_i32_0 : i32, i32
  }
  func.func @transform_2(%arg0: i32) -> (i32, i32) {
    %c0_i32 = arith.constant 0 : i32
    %c0_i32_0 = arith.constant 0 : i32
    %c0_i32_1 = arith.constant 0 : i32
    return %c0_i32, %c0_i32_0 : i32, i32
  }
  func.func @transform_3(%arg0: i32) -> (i32, i32) {
    %c0_i32 = arith.constant 0 : i32
    %c0_i32_0 = arith.constant 0 : i32
    return %arg0, %c0_i32 : i32, i32
  }
}

</mosaic_0001>

<llo_original>
// kernel: tpu_custom_call.1
$region0: #{tpu_custom_call.1}
  #allocation0 [shape = 'u32[]', space=smem, size = 0x4, offset = 0x4, fixed_abs, tag = 'smem constant byte address 0x4 - core index']
  #allocation1 [shape = 'u32[72,128]{1,0:T(1,128)}', space=vmem, size = 0x9000, scoped, tag = 'internal scratch']
  %s0 = inlined_call_operand.vmem [shape: f32[2317,27], index: 0, kind: input, shape index: {}]
  %s1 = inlined_call_operand.vmem [shape: f32[27,128], index: 1, kind: input, shape index: {}]
  %s2 = inlined_call_operand.vmem [shape: f32[1,128], index: 2, kind: input, shape index: {}]
  %s3 = inlined_call_operand.hbm [shape: f32[2317,128], index: 3, kind: output, shape index: {}]
  %s4 = sld [smem:[#allocation0]]
  $region45: #{tpu_custom_call.1} parent=0
    _
  %s6 = ssub.s32 1, %s4
  %s7 = scalar_select 0, %s6, %s4
  $region1: #{tpu_custom_call.1} parent=0
    #allocation2 [shape = 'u8[1187840]{0}', space=vmem, size = 0x122000, scoped, tag = 'output window, operand 0']
    #allocation3 [shape = 's32[2]{0}', space=sflag, size = 0x8, scoped, tag = 'scoped memory for tpu_custom_call.1']
    %8 = vsyncpa [#allocation3], 0
    %s9 = scalar_lea.sflag [#allocation3], 1
    %10 = vsyncpa %s9, 0
    loop: start=0, step=1, limit=4
    $region2: #{tpu_custom_call.1} parent=1 // loop_pre_header
      _
    $region3: #{tpu_custom_call.1} parent=1 // loop_header
      %s12 = sphi 0, %s16
      %p13 = scmp.ge.s32.totalorder %s12, 4
      %s22 = sphi 0, %s24
      %s25 = sphi 0, %s22
      %s26 = sphi 0, %s25
      %s42 = sphi 0, %s26
      %s46 = sphi 0, %s46
      %s48 = sphi 0, %s46
      %s49 = sphi 0, %s48
      %s63 = sphi 0, %s49
      %s67 = sphi 0, %s67
      %s69 = sphi 0, %s67
      %s70 = sphi 0, %s69
      %s84 = sphi 0, %s70
      %s90 = sphi 0, %s92
      %s93 = sphi 0, %s90
      %s94 = sphi 0, %s93
      %s110 = sphi 0, %s94
    $region4: #{tpu_custom_call.1} parent=1 // loop_header_branch
      %15 = sbr.rel (%p13) target = $region8
    $region5: #{tpu_custom_call.1} parent=1 // loop_body
      %s17 = ssub.s32 %s12, 1
      %s18 = ssub.s32 %s12, 2
      %s19 = sadd.s32 %s12, 1
      %s20 = ssub.s32 %s12, %s19
      %p21 = scmp.eq.s32.totalorder %s20, 0
      %s23 = sadd.s32 %s22, 1
      %s24 = scalar_select %p21, %s22, %s23
      %p27 = pneg %p21
      %p28 = scmp.eq.s32.totalorder %s12, 1
      %p29 = por %p27, %p28
      %p30 = scmp.ne.s32.totalorder %s22, %s25
      %p31 = scmp.eq.s32.totalorder %s12, 0
      %p32 = por %p30, %p31
      %p33 = scmp.ne.s32.totalorder %s22, %s25
      %p34 = scmp.eq.s32.totalorder %s17, 1
      %p35 = por %p33, %p34
      %p36 = scmp.ne.s32.totalorder %s25, %s26
      %p37 = scmp.eq.s32.totalorder %s17, 0
      %p38 = por %p36, %p37
      %p39 = scmp.ne.s32.totalorder %s25, %s26
      %p40 = scmp.eq.s32.totalorder %s18, 1
      %p41 = por %p39, %p40
      %p43 = scmp.ne.s32.totalorder %s26, %s42
      %p44 = scmp.eq.s32.totalorder %s18, 0
      %p45 = por %p43, %p44
      %s47 = sadd.s32 %s46, 1
      %p50 = scmp.eq.s32.totalorder %s12, 1
      %p51 = scmp.ne.s32.totalorder %s46, %s48
      %p52 = scmp.eq.s32.totalorder %s12, 0
      %p53 = por %p51, %p52
      %p54 = scmp.ne.s32.totalorder %s46, %s48
      %p55 = scmp.eq.s32.totalorder %s17, 1
      %p56 = por %p54, %p55
      %p57 = scmp.ne.s32.totalorder %s48, %s49
      %p58 = scmp.eq.s32.totalorder %s17, 0
      %p59 = por %p57, %p58
      %p60 = scmp.ne.s32.totalorder %s48, %s49
      %p61 = scmp.eq.s32.totalorder %s18, 1
      %p62 = por %p60, %p61
      %p64 = scmp.ne.s32.totalorder %s49, %s63
      %p65 = scmp.eq.s32.totalorder %s18, 0
      %p66 = por %p64, %p65
      %s68 = sadd.s32 %s67, 1
      %p71 = scmp.eq.s32.totalorder %s12, 1
      %p72 = scmp.ne.s32.totalorder %s67, %s69
      %p73 = scmp.eq.s32.totalorder %s12, 0
      %p74 = por %p72, %p73
      %p75 = scmp.ne.s32.totalorder %s67, %s69
      %p76 = scmp.eq.s32.totalorder %s17, 1
      %p77 = por %p75, %p76
      %p78 = scmp.ne.s32.totalorder %s69, %s70
      %p79 = scmp.eq.s32.totalorder %s17, 0
      %p80 = por %p78, %p79
      %p81 = scmp.ne.s32.totalorder %s69, %s70
      %p82 = scmp.eq.s32.totalorder %s18, 1
      %p83 = por %p81, %p82
      %p85 = scmp.ne.s32.totalorder %s70, %s84
      %p86 = scmp.eq.s32.totalorder %s18, 0
      %p87 = por %p85, %p86
      %s88 = ssub.s32 %s12, %s19
      %p89 = scmp.eq.s32.totalorder %s88, 0
      %s91 = sadd.s32 %s90, 1
      %s92 = scalar_select %p89, %s90, %s91
      %p95 = pneg %p89
      %p96 = scmp.eq.s32.totalorder %s12, 1
      %p97 = por %p95, %p96
      %p98 = scmp.ne.s32.totalorder %s90, %s93
      %p99 = scmp.eq.s32.totalorder %s12, 0
      %p100 = por %p98, %p99
      %p101 = scmp.ne.s32.totalorder %s90, %s93
      %p102 = scmp.eq.s32.totalorder %s17, 1
      %p103 = por %p101, %p102
      %p104 = scmp.ne.s32.totalorder %s93, %s94
      %p105 = scmp.eq.s32.totalorder %s17, 0
      %p106 = por %p104, %p105
      %p107 = scmp.ne.s32.totalorder %s93, %s94
      %p108 = scmp.eq.s32.totalorder %s18, 1
      %p109 = por %p107, %p108
      %p111 = scmp.ne.s32.totalorder %s94, %s110
      %p112 = scmp.eq.s32.totalorder %s18, 0
      %p113 = por %p111, %p112
      %p114 = scmp.le.s32.totalorder 1, %s12
      %p115 = scmp.lt.s32.totalorder %s12, 3
      %p116 = pnand %p114, %p115
      %p117 = pneg %p116
      // Predicated region
      $region9: #{tpu_custom_call.1} parent=5 // pred_check
        _
      $region10: #{tpu_custom_call.1} parent=5 // pred_check_branch
        %119 = sbr.rel (%p116) target = $region12
      $region11: #{tpu_custom_call.1} parent=5 // pred_region
        %s120 = ssub.s32 %s12, 1
        // Predicated region
        $region13: #{tpu_custom_call.1} parent=11 // pred_check
          %p121 = pneg %p59
        $region14: #{tpu_custom_call.1} parent=11 // pred_check_branch
          %123 = sbr.rel (%p121) target = $region16
        $region15: #{tpu_custom_call.1} parent=11 // pred_region
          _
        $region16: #{tpu_custom_call.1} parent=11 // pred_fallthru
          _
        // Predicated region
        $region17: #{tpu_custom_call.1} parent=11 // pred_check
          %p124 = pneg %p80
        $region18: #{tpu_custom_call.1} parent=11 // pred_check_branch
          %126 = sbr.rel (%p124) target = $region20
        $region19: #{tpu_custom_call.1} parent=11 // pred_region
          _
        $region20: #{tpu_custom_call.1} parent=11 // pred_fallthru
          _
      $region12: #{tpu_custom_call.1} parent=5 // pred_fallthru
        _
      %p127 = scmp.lt.s32.totalorder %s12, 2
      // Predicated region
      $region21: #{tpu_custom_call.1} parent=5 // pred_check
        %p128 = pneg %p127
      $region22: #{tpu_custom_call.1} parent=5 // pred_check_branch
        %130 = sbr.rel (%p128) target = $region24
      $region23: #{tpu_custom_call.1} parent=5 // pred_region
        // Predicated region
        $region25: #{tpu_custom_call.1} parent=23 // pred_check
          %p131 = pneg %p32
        $region26: #{tpu_custom_call.1} parent=23 // pred_check_branch
          %133 = sbr.rel (%p131) target = $region28
        $region27: #{tpu_custom_call.1} parent=23 // pred_region
          %s134 = smul.u32 145, %s12
          %p135 = scmp.lt.s32.totalorder %s134, 289
          %s136 = scalar_select %p135, %s134, 289
          %s137 = smul.addr %s136, 8
          %s138 = scalar_lea.vmem %s0, %s137
          %s139 = smul.u32 145, %s12
        $region28: #{tpu_custom_call.1} parent=23 // pred_fallthru
          _
      $region24: #{tpu_custom_call.1} parent=5 // pred_fallthru
        _
      %p140 = scmp.le.s32.totalorder 1, %s12
      %p141 = scmp.lt.s32.totalorder %s12, 3
      %p142 = pnand %p140, %p141
      %p143 = pneg %p142
      // Predicated region
      $region29: #{tpu_custom_call.1} parent=5 // pred_check
        _
      $region30: #{tpu_custom_call.1} parent=5 // pred_check_branch
        %145 = sbr.rel (%p142) target = $region32
      $region31: #{tpu_custom_call.1} parent=5 // pred_region
        %s146 = ssub.s32 %s12, 1
        %s147 = smul.u32 145, %s17
        %p148 = scmp.lt.s32.totalorder %s147, 289
        %s149 = scalar_select %p148, %s147, 289
        %s150 = smul.addr %s149, 8
        %s151 = scalar_lea.vmem %s0, %s150
        %p152 = pneg %p38
        %p153 = pneg %p35
        %p154 = pneg %p59
        %p155 = pneg %p56
        %p156 = pneg %p80
        %p157 = pneg %p77
        %p158 = pneg %p106
        %p159 = pneg %p103
        %s160 = sand.u32 %s93, 1
        %s161 = scalar_lea.sflag [#allocation3], %s160
        %s162 = sand.u32 %s93, 1
        %s163 = smul.addr %s162, 1160
        %s164 = scalar_lea.vmem [#allocation2], %s163
        %s165 = smul.u32 145, %s17
        %p166 = scmp.lt.s32.totalorder %s165, 289
        %s167 = scalar_select %p166, %s165, 289
        %s168 = smul.addr %s167, 8
        %s169 = scalar_lea.vmem %s0, %s168
        %s170 = smul.u32 145, %s17
        %s171 = smul.u32 145, %s17
        %v172 = vld [vmem:[%s169] sm:$0xff]
        %v173 = vld [vmem:[%s169 + $0x8] sm:$0xff]
        %v174 = vld [vmem:[%s169 + $0x10] sm:$0xff]
        %v175 = vld [vmem:[%s169 + $0x18] sm:$0xff]
        %v176 = vld [vmem:[%s169 + $0x20] sm:$0xff]
        %v177 = vld [vmem:[%s169 + $0x28] sm:$0xff]
        %v178 = vld [vmem:[%s169 + $0x30] sm:$0xff]
        %v179 = vld [vmem:[%s169 + $0x38] sm:$0xff]
        %v180 = vld [vmem:[%s169 + $0x40] sm:$0xff]
        %v181 = vld [vmem:[%s169 + $0x48] sm:$0xff]
        %v182 = vld [vmem:[%s169 + $0x50] sm:$0xff]
        %v183 = vld [vmem:[%s169 + $0x58] sm:$0xff]
        %v184 = vld [vmem:[%s169 + $0x60] sm:$0xff]
        %v185 = vld [vmem:[%s169 + $0x68] sm:$0xff]
        %v186 = vld [vmem:[%s169 + $0x70] sm:$0xff]
        %v187 = vld [vmem:[%s169 + $0x78] sm:$0xff]
        %v188 = vld [vmem:[%s169 + $0x80] sm:$0xff]
        %v189 = vld [vmem:[%s169 + $0x88] sm:$0xff]
        %v190 = vld [vmem:[%s169 + $0x90] sm:$0xff]
        %v191 = vld [vmem:[%s169 + $0x98] sm:$0xff]
        %v192 = vld [vmem:[%s169 + $0xa0] sm:$0xff]
        %v193 = vld [vmem:[%s169 + $0xa8] sm:$0xff]
        %v194 = vld [vmem:[%s169 + $0xb0] sm:$0xff]
        %v195 = vld [vmem:[%s169 + $0xb8] sm:$0xff]
        %v196 = vld [vmem:[%s169 + $0xc0] sm:$0xff]
        %v197 = vld [vmem:[%s169 + $0xc8] sm:$0xff]
        %v198 = vld [vmem:[%s169 + $0xd0] sm:$0xff]
        %v199 = vld [vmem:[%s169 + $0xd8] sm:$0xff]
        %v200 = vld [vmem:[%s169 + $0xe0] sm:$0xff]
        %v201 = vld [vmem:[%s169 + $0xe8] sm:$0xff]
        %v202 = vld [vmem:[%s169 + $0xf0] sm:$0xff]
        %v203 = vld [vmem:[%s169 + $0xf8] sm:$0xff]
        %v204 = vld [vmem:[%s169 + $0x100] sm:$0xff]
        %v205 = vld [vmem:[%s169 + $0x108] sm:$0xff]
        %v206 = vld [vmem:[%s169 + $0x110] sm:$0xff]
        %v207 = vld [vmem:[%s169 + $0x118] sm:$0xff]
        %v208 = vld [vmem:[%s169 + $0x120] sm:$0xff]
        %v209 = vld [vmem:[%s169 + $0x128] sm:$0xff]
        %v210 = vld [vmem:[%s169 + $0x130] sm:$0xff]
        %v211 = vld [vmem:[%s169 + $0x138] sm:$0xff]
        %v212 = vld [vmem:[%s169 + $0x140] sm:$0xff]
        %v213 = vld [vmem:[%s169 + $0x148] sm:$0xff]
        %v214 = vld [vmem:[%s169 + $0x150] sm:$0xff]
        %v215 = vld [vmem:[%s169 + $0x158] sm:$0xff]
        %v216 = vld [vmem:[%s169 + $0x160] sm:$0xff]
        %v217 = vld [vmem:[%s169 + $0x168] sm:$0xff]
        %v218 = vld [vmem:[%s169 + $0x170] sm:$0xff]
        %v219 = vld [vmem:[%s169 + $0x178] sm:$0xff]
        %v220 = vld [vmem:[%s169 + $0x180] sm:$0xff]
        %v221 = vld [vmem:[%s169 + $0x188] sm:$0xff]
        %v222 = vld [vmem:[%s169 + $0x190] sm:$0xff]
        %v223 = vld [vmem:[%s169 + $0x198] sm:$0xff]
        %v224 = vld [vmem:[%s169 + $0x1a0] sm:$0xff]
        %v225 = vld [vmem:[%s169 + $0x1a8] sm:$0xff]
        %v226 = vld [vmem:[%s169 + $0x1b0] sm:$0xff]
        %v227 = vld [vmem:[%s169 + $0x1b8] sm:$0xff]
        %v228 = vld [vmem:[%s169 + $0x1c0] sm:$0xff]
        %v229 = vld [vmem:[%s169 + $0x1c8] sm:$0xff]
        %v230 = vld [vmem:[%s169 + $0x1d0] sm:$0xff]
        %v231 = vld [vmem:[%s169 + $0x1d8] sm:$0xff]
        %v232 = vld [vmem:[%s169 + $0x1e0] sm:$0xff]
        %v233 = vld [vmem:[%s169 + $0x1e8] sm:$0xff]
        %v234 = vld [vmem:[%s169 + $0x1f0] sm:$0xff]
        %v235 = vld [vmem:[%s169 + $0x1f8] sm:$0xff]
        %v236 = vld [vmem:[%s169 + $0x200] sm:$0xff]
        %v237 = vld [vmem:[%s169 + $0x208] sm:$0xff]
        %v238 = vld [vmem:[%s169 + $0x210] sm:$0xff]
        %v239 = vld [vmem:[%s169 + $0x218] sm:$0xff]
        %v240 = vld [vmem:[%s169 + $0x220] sm:$0xff]
        %v241 = vld [vmem:[%s169 + $0x228] sm:$0xff]
        %v242 = vld [vmem:[%s169 + $0x230] sm:$0xff]
        %v243 = vld [vmem:[%s169 + $0x238] sm:$0xff]
        %v244 = vld [vmem:[%s169 + $0x240] sm:$0xff]
        %v245 = vld [vmem:[%s169 + $0x248] sm:$0xff]
        %v246 = vld [vmem:[%s169 + $0x250] sm:$0xff]
        %v247 = vld [vmem:[%s169 + $0x258] sm:$0xff]
        %v248 = vld [vmem:[%s169 + $0x260] sm:$0xff]
        %v249 = vld [vmem:[%s169 + $0x268] sm:$0xff]
        %v250 = vld [vmem:[%s169 + $0x270] sm:$0xff]
        %v251 = vld [vmem:[%s169 + $0x278] sm:$0xff]
        %v252 = vld [vmem:[%s169 + $0x280] sm:$0xff]
        %v253 = vld [vmem:[%s169 + $0x288] sm:$0xff]
        %v254 = vld [vmem:[%s169 + $0x290] sm:$0xff]
        %v255 = vld [vmem:[%s169 + $0x298] sm:$0xff]
        %v256 = vld [vmem:[%s169 + $0x2a0] sm:$0xff]
        %v257 = vld [vmem:[%s169 + $0x2a8] sm:$0xff]
        %v258 = vld [vmem:[%s169 + $0x2b0] sm:$0xff]
        %v259 = vld [vmem:[%s169 + $0x2b8] sm:$0xff]
        %v260 = vld [vmem:[%s169 + $0x2c0] sm:$0xff]
        %v261 = vld [vmem:[%s169 + $0x2c8] sm:$0xff]
        %v262 = vld [vmem:[%s169 + $0x2d0] sm:$0xff]
        %v263 = vld [vmem:[%s169 + $0x2d8] sm:$0xff]
        %v264 = vld [vmem:[%s169 + $0x2e0] sm:$0xff]
        %v265 = vld [vmem:[%s169 + $0x2e8] sm:$0xff]
        %v266 = vld [vmem:[%s169 + $0x2f0] sm:$0xff]
        %v267 = vld [vmem:[%s169 + $0x2f8] sm:$0xff]
        %v268 = vld [vmem:[%s169 + $0x300] sm:$0xff]
        %v269 = vld [vmem:[%s169 + $0x308] sm:$0xff]
        %v270 = vld [vmem:[%s169 + $0x310] sm:$0xff]
        %v271 = vld [vmem:[%s169 + $0x318] sm:$0xff]
        %v272 = vld [vmem:[%s169 + $0x320] sm:$0xff]
        %v273 = vld [vmem:[%s169 + $0x328] sm:$0xff]
        %v274 = vld [vmem:[%s169 + $0x330] sm:$0xff]
        %v275 = vld [vmem:[%s169 + $0x338] sm:$0xff]
        %v276 = vld [vmem:[%s169 + $0x340] sm:$0xff]
        %v277 = vld [vmem:[%s169 + $0x348] sm:$0xff]
        %v278 = vld [vmem:[%s169 + $0x350] sm:$0xff]
        %v279 = vld [vmem:[%s169 + $0x358] sm:$0xff]
        %v280 = vld [vmem:[%s169 + $0x360] sm:$0xff]
        %v281 = vld [vmem:[%s169 + $0x368] sm:$0xff]
        %v282 = vld [vmem:[%s169 + $0x370] sm:$0xff]
        %v283 = vld [vmem:[%s169 + $0x378] sm:$0xff]
        %v284 = vld [vmem:[%s169 + $0x380] sm:$0xff]
        %v285 = vld [vmem:[%s169 + $0x388] sm:$0xff]
        %v286 = vld [vmem:[%s169 + $0x390] sm:$0xff]
        %v287 = vld [vmem:[%s169 + $0x398] sm:$0xff]
        %v288 = vld [vmem:[%s169 + $0x3a0] sm:$0xff]
        %v289 = vld [vmem:[%s169 + $0x3a8] sm:$0xff]
        %v290 = vld [vmem:[%s169 + $0x3b0] sm:$0xff]
        %v291 = vld [vmem:[%s169 + $0x3b8] sm:$0xff]
        %v292 = vld [vmem:[%s169 + $0x3c0] sm:$0xff]
        %v293 = vld [vmem:[%s169 + $0x3c8] sm:$0xff]
        %v294 = vld [vmem:[%s169 + $0x3d0] sm:$0xff]
        %v295 = vld [vmem:[%s169 + $0x3d8] sm:$0xff]
        %v296 = vld [vmem:[%s169 + $0x3e0] sm:$0xff]
        %v297 = vld [vmem:[%s169 + $0x3e8] sm:$0xff]
        %v298 = vld [vmem:[%s169 + $0x3f0] sm:$0xff]
        %v299 = vld [vmem:[%s169 + $0x3f8] sm:$0xff]
        %v300 = vld [vmem:[%s169 + $0x400] sm:$0xff]
        %v301 = vld [vmem:[%s169 + $0x408] sm:$0xff]
        %v302 = vld [vmem:[%s169 + $0x410] sm:$0xff]
        %v303 = vld [vmem:[%s169 + $0x418] sm:$0xff]
        %v304 = vld [vmem:[%s169 + $0x420] sm:$0xff]
        %v305 = vld [vmem:[%s169 + $0x428] sm:$0xff]
        %v306 = vld [vmem:[%s169 + $0x430] sm:$0xff]
        %v307 = vld [vmem:[%s169 + $0x438] sm:$0xff]
        %v308 = vld [vmem:[%s169 + $0x440] sm:$0xff]
        %v309 = vld [vmem:[%s169 + $0x448] sm:$0xff]
        %v310 = vld [vmem:[%s169 + $0x450] sm:$0xff]
        %v311 = vld [vmem:[%s169 + $0x458] sm:$0xff]
        %v312 = vld [vmem:[%s169 + $0x460] sm:$0xff]
        %v313 = vld [vmem:[%s169 + $0x468] sm:$0xff]
        %v314 = vld [vmem:[%s169 + $0x470] sm:$0xff]
        %v315 = vld [vmem:[%s169 + $0x478] sm:$0xff]
        %v316 = vld [vmem:[%s169 + $0x480] sm:$0xff]
        %v317 = vld [vmem:[%s1] sm:$0xff]
        %v318 = vld [vmem:[%s1 + $0x8] sm:$0xff]
        %v319 = vld [vmem:[%s1 + $0x10] sm:$0xff]
        %v320 = vld [vmem:[%s1 + $0x18] sm:$0x7]
        %v321 = vld [vmem:[%s2] sm:$0x1]
        %v323 = vperm.slane %v321, 0
        %vm325 = vcmask 220160
        %v327 = vsel %vm325, %v172, 0
        %v330 = vsel %vm325, %v173, 0
        %v333 = vsel %vm325, %v174, 0
        %v336 = vsel %vm325, %v175, 0
        %v339 = vsel %vm325, %v176, 0
        %v342 = vsel %vm325, %v177, 0
        %v345 = vsel %vm325, %v178, 0
        %v348 = vsel %vm325, %v179, 0
        %v351 = vsel %vm325, %v180, 0
        %v354 = vsel %vm325, %v181, 0
        %v357 = vsel %vm325, %v182, 0
        %v360 = vsel %vm325, %v183, 0
        %v363 = vsel %vm325, %v184, 0
        %v366 = vsel %vm325, %v185, 0
        %v369 = vsel %vm325, %v186, 0
        %v372 = vsel %vm325, %v187, 0
        %v375 = vsel %vm325, %v188, 0
        %v378 = vsel %vm325, %v189, 0
        %v381 = vsel %vm325, %v190, 0
        %v384 = vsel %vm325, %v191, 0
        %v387 = vsel %vm325, %v192, 0
        %v390 = vsel %vm325, %v193, 0
        %v393 = vsel %vm325, %v194, 0
        %v396 = vsel %vm325, %v195, 0
        %v399 = vsel %vm325, %v196, 0
        %v402 = vsel %vm325, %v197, 0
        %v405 = vsel %vm325, %v198, 0
        %v408 = vsel %vm325, %v199, 0
        %v411 = vsel %vm325, %v200, 0
        %v414 = vsel %vm325, %v201, 0
        %v417 = vsel %vm325, %v202, 0
        %v420 = vsel %vm325, %v203, 0
        %v423 = vsel %vm325, %v204, 0
        %v426 = vsel %vm325, %v205, 0
        %v429 = vsel %vm325, %v206, 0
        %v432 = vsel %vm325, %v207, 0
        %v435 = vsel %vm325, %v208, 0
        %v438 = vsel %vm325, %v209, 0
        %v441 = vsel %vm325, %v210, 0
        %v444 = vsel %vm325, %v211, 0
        %v447 = vsel %vm325, %v212, 0
        %v450 = vsel %vm325, %v213, 0
        %v453 = vsel %vm325, %v214, 0
        %v456 = vsel %vm325, %v215, 0
        %v459 = vsel %vm325, %v216, 0
        %v462 = vsel %vm325, %v217, 0
        %v465 = vsel %vm325, %v218, 0
        %v468 = vsel %vm325, %v219, 0
        %v471 = vsel %vm325, %v220, 0
        %v474 = vsel %vm325, %v221, 0
        %v477 = vsel %vm325, %v222, 0
        %v480 = vsel %vm325, %v223, 0
        %v483 = vsel %vm325, %v224, 0
        %v486 = vsel %vm325, %v225, 0
        %v489 = vsel %vm325, %v226, 0
        %v492 = vsel %vm325, %v227, 0
        %v495 = vsel %vm325, %v228, 0
        %v498 = vsel %vm325, %v229, 0
        %v501 = vsel %vm325, %v230, 0
        %v504 = vsel %vm325, %v231, 0
        %v507 = vsel %vm325, %v232, 0
        %v510 = vsel %vm325, %v233, 0
        %v513 = vsel %vm325, %v234, 0
        %v516 = vsel %vm325, %v235, 0
        %v519 = vsel %vm325, %v236, 0
        %v522 = vsel %vm325, %v237, 0
        %v525 = vsel %vm325, %v238, 0
        %v528 = vsel %vm325, %v239, 0
        %v531 = vsel %vm325, %v240, 0
        %v534 = vsel %vm325, %v241, 0
        %v537 = vsel %vm325, %v242, 0
        %v540 = vsel %vm325, %v243, 0
        %v543 = vsel %vm325, %v244, 0
        %v546 = vsel %vm325, %v245, 0
        %v549 = vsel %vm325, %v246, 0
        %v552 = vsel %vm325, %v247, 0
        %v555 = vsel %vm325, %v248, 0
        %v558 = vsel %vm325, %v249, 0
        %v561 = vsel %vm325, %v250, 0
        %v564 = vsel %vm325, %v251, 0
        %v567 = vsel %vm325, %v252, 0
        %v570 = vsel %vm325, %v253, 0
        %v573 = vsel %vm325, %v254, 0
        %v576 = vsel %vm325, %v255, 0
        %v579 = vsel %vm325, %v256, 0
        %v582 = vsel %vm325, %v257, 0
        %v585 = vsel %vm325, %v258, 0
        %v588 = vsel %vm325, %v259, 0
        %v591 = vsel %vm325, %v260, 0
        %v594 = vsel %vm325, %v261, 0
        %v597 = vsel %vm325, %v262, 0
        %v600 = vsel %vm325, %v263, 0
        %v603 = vsel %vm325, %v264, 0
        %v606 = vsel %vm325, %v265, 0
        %v609 = vsel %vm325, %v266, 0
        %v612 = vsel %vm325, %v267, 0
        %v615 = vsel %vm325, %v268, 0
        %v618 = vsel %vm325, %v269, 0
        %v621 = vsel %vm325, %v270, 0
        %v624 = vsel %vm325, %v271, 0
        %v627 = vsel %vm325, %v272, 0
        %v630 = vsel %vm325, %v273, 0
        %v633 = vsel %vm325, %v274, 0
        %v636 = vsel %vm325, %v275, 0
        %v639 = vsel %vm325, %v276, 0
        %v642 = vsel %vm325, %v277, 0
        %v645 = vsel %vm325, %v278, 0
        %v648 = vsel %vm325, %v279, 0
        %v651 = vsel %vm325, %v280, 0
        %v654 = vsel %vm325, %v281, 0
        %v657 = vsel %vm325, %v282, 0
        %v660 = vsel %vm325, %v283, 0
        %v663 = vsel %vm325, %v284, 0
        %v666 = vsel %vm325, %v285, 0
        %v669 = vsel %vm325, %v286, 0
        %v672 = vsel %vm325, %v287, 0
        %v675 = vsel %vm325, %v288, 0
        %v678 = vsel %vm325, %v289, 0
        %v681 = vsel %vm325, %v290, 0
        %v684 = vsel %vm325, %v291, 0
        %v687 = vsel %vm325, %v292, 0
        %v690 = vsel %vm325, %v293, 0
        %v693 = vsel %vm325, %v294, 0
        %v696 = vsel %vm325, %v295, 0
        %v699 = vsel %vm325, %v296, 0
        %v702 = vsel %vm325, %v297, 0
        %v705 = vsel %vm325, %v298, 0
        %v708 = vsel %vm325, %v299, 0
        %v711 = vsel %vm325, %v300, 0
        %v714 = vsel %vm325, %v301, 0
        %v717 = vsel %vm325, %v302, 0
        %v720 = vsel %vm325, %v303, 0
        %v723 = vsel %vm325, %v304, 0
        %v726 = vsel %vm325, %v305, 0
        %v729 = vsel %vm325, %v306, 0
        %v732 = vsel %vm325, %v307, 0
        %v735 = vsel %vm325, %v308, 0
        %v738 = vsel %vm325, %v309, 0
        %v741 = vsel %vm325, %v310, 0
        %v744 = vsel %vm325, %v311, 0
        %v747 = vsel %vm325, %v312, 0
        %v750 = vsel %vm325, %v313, 0
        %v753 = vsel %vm325, %v314, 0
        %v756 = vsel %vm325, %v315, 0
        %v759 = vsel %vm325, %v316, 0
        %vm761 = vcmask 1042432
        %v763 = vsel %vm761, %v320, 0
        %765 = vmatpush.msra.mxu0 0.0
        %766 = vmatpush.msra.mxu0 0.0
        %767 = vmatpush.msra.mxu0 0.0
        %768 = vmatpush.msra.mxu0 0.0
        %769 = vmatpush.msra.mxu0 0.0
        %770 = vmatpush.msra.mxu0 0.0
        %771 = vmatpush.msra.mxu0 0.0
        %772 = vmatpush.msra.mxu0 0.0
        %773 = vmatpush.msra.mxu0 0.0
        %774 = vmatpush.msra.mxu0 0.0
        %775 = vmatpush.msra.mxu0 0.0
        %776 = vmatpush.msra.mxu0 0.0
        %777 = vmatpush.msra.mxu0 %v763
        %778 = vmatpush.msra.mxu0 %v319
        %779 = vmatpush.msra.mxu0 %v318
        %780 = vmatpush.msra.mxu0 %v317
        %781 = vmatmul.f32.gmra.mxu0 %v327
        %v782 = vpop.f32.mrf.mxu0
        %v783 = vadd.f32 %v323, %v782
        %784 = vmatmul.f32.gmra.mxu0 %v330
        %v785 = vpop.f32.mrf.mxu0
        %v786 = vadd.f32 %v323, %v785
        %787 = vmatmul.f32.gmra.mxu0 %v333
        %v788 = vpop.f32.mrf.mxu0
        %v789 = vadd.f32 %v323, %v788
        %790 = vmatmul.f32.gmra.mxu0 %v336
        %v791 = vpop.f32.mrf.mxu0
        %v792 = vadd.f32 %v323, %v791
        %793 = vmatmul.f32.gmra.mxu0 %v339
        %v794 = vpop.f32.mrf.mxu0
        %v795 = vadd.f32 %v323, %v794
        %796 = vmatmul.f32.gmra.mxu0 %v342
        %v797 = vpop.f32.mrf.mxu0
        %v798 = vadd.f32 %v323, %v797
        %799 = vmatmul.f32.gmra.mxu0 %v345
        %v800 = vpop.f32.mrf.mxu0
        %v801 = vadd.f32 %v323, %v800
        %802 = vmatmul.f32.gmra.mxu0 %v348
        %v803 = vpop.f32.mrf.mxu0
        %v804 = vadd.f32 %v323, %v803
        %805 = vmatmul.f32.gmra.mxu0 %v351
        %v806 = vpop.f32.mrf.mxu0
        %v807 = vadd.f32 %v323, %v806
        %808 = vmatmul.f32.gmra.mxu0 %v354
        %v809 = vpop.f32.mrf.mxu0
        %v810 = vadd.f32 %v323, %v809
        %811 = vmatmul.f32.gmra.mxu0 %v357
        %v812 = vpop.f32.mrf.mxu0
        %v813 = vadd.f32 %v323, %v812
        %814 = vmatmul.f32.gmra.mxu0 %v360
        %v815 = vpop.f32.mrf.mxu0
        %v816 = vadd.f32 %v323, %v815
        %817 = vmatmul.f32.gmra.mxu0 %v363
        %v818 = vpop.f32.mrf.mxu0
        %v819 = vadd.f32 %v323, %v818
        %820 = vmatmul.f32.gmra.mxu0 %v366
        %v821 = vpop.f32.mrf.mxu0
        %v822 = vadd.f32 %v323, %v821
        %823 = vmatmul.f32.gmra.mxu0 %v369
        %v824 = vpop.f32.mrf.mxu0
        %v825 = vadd.f32 %v323, %v824
        %826 = vmatmul.f32.gmra.mxu0 %v372
        %v827 = vpop.f32.mrf.mxu0
        %v828 = vadd.f32 %v323, %v827
        %829 = vmatmul.f32.gmra.mxu0 %v375
        %v830 = vpop.f32.mrf.mxu0
        %v831 = vadd.f32 %v323, %v830
        %832 = vmatmul.f32.gmra.mxu0 %v378
        %v833 = vpop.f32.mrf.mxu0
        %v834 = vadd.f32 %v323, %v833
        %835 = vmatmul.f32.gmra.mxu0 %v381
        %v836 = vpop.f32.mrf.mxu0
        %v837 = vadd.f32 %v323, %v836
        %838 = vmatmul.f32.gmra.mxu0 %v384
        %v839 = vpop.f32.mrf.mxu0
        %v840 = vadd.f32 %v323, %v839
        %841 = vmatmul.f32.gmra.mxu0 %v387
        %v842 = vpop.f32.mrf.mxu0
        %v843 = vadd.f32 %v323, %v842
        %844 = vmatmul.f32.gmra.mxu0 %v390
        %v845 = vpop.f32.mrf.mxu0
        %v846 = vadd.f32 %v323, %v845
        %847 = vmatmul.f32.gmra.mxu0 %v393
        %v848 = vpop.f32.mrf.mxu0
        %v849 = vadd.f32 %v323, %v848
        %850 = vmatmul.f32.gmra.mxu0 %v396
        %v851 = vpop.f32.mrf.mxu0
        %v852 = vadd.f32 %v323, %v851
        %853 = vmatmul.f32.gmra.mxu0 %v399
        %v854 = vpop.f32.mrf.mxu0
        %v855 = vadd.f32 %v323, %v854
        %856 = vmatmul.f32.gmra.mxu0 %v402
        %v857 = vpop.f32.mrf.mxu0
        %v858 = vadd.f32 %v323, %v857
        %859 = vmatmul.f32.gmra.mxu0 %v405
        %v860 = vpop.f32.mrf.mxu0
        %v861 = vadd.f32 %v323, %v860
        %862 = vmatmul.f32.gmra.mxu0 %v408
        %v863 = vpop.f32.mrf.mxu0
        %v864 = vadd.f32 %v323, %v863
        %865 = vmatmul.f32.gmra.mxu0 %v411
        %v866 = vpop.f32.mrf.mxu0
        %v867 = vadd.f32 %v323, %v866
        %868 = vmatmul.f32.gmra.mxu0 %v414
        %v869 = vpop.f32.mrf.mxu0
        %v870 = vadd.f32 %v323, %v869
        %871 = vmatmul.f32.gmra.mxu0 %v417
        %v872 = vpop.f32.mrf.mxu0
        %v873 = vadd.f32 %v323, %v872
        %874 = vmatmul.f32.gmra.mxu0 %v420
        %v875 = vpop.f32.mrf.mxu0
        %v876 = vadd.f32 %v323, %v875
        %877 = vmatmul.f32.gmra.mxu0 %v423
        %v878 = vpop.f32.mrf.mxu0
        %v879 = vadd.f32 %v323, %v878
        %880 = vmatmul.f32.gmra.mxu0 %v426
        %v881 = vpop.f32.mrf.mxu0
        %v882 = vadd.f32 %v323, %v881
        %883 = vmatmul.f32.gmra.mxu0 %v429
        %v884 = vpop.f32.mrf.mxu0
        %v885 = vadd.f32 %v323, %v884
        %886 = vmatmul.f32.gmra.mxu0 %v432
        %v887 = vpop.f32.mrf.mxu0
        %v888 = vadd.f32 %v323, %v887
        %889 = vmatmul.f32.gmra.mxu0 %v435
        %v890 = vpop.f32.mrf.mxu0
        %v891 = vadd.f32 %v323, %v890
        %892 = vmatmul.f32.gmra.mxu0 %v438
        %v893 = vpop.f32.mrf.mxu0
        %v894 = vadd.f32 %v323, %v893
        %895 = vmatmul.f32.gmra.mxu0 %v441
        %v896 = vpop.f32.mrf.mxu0
        %v897 = vadd.f32 %v323, %v896
        %898 = vmatmul.f32.gmra.mxu0 %v444
        %v899 = vpop.f32.mrf.mxu0
        %v900 = vadd.f32 %v323, %v899
        %901 = vmatmul.f32.gmra.mxu0 %v447
        %v902 = vpop.f32.mrf.mxu0
        %v903 = vadd.f32 %v323, %v902
        %904 = vmatmul.f32.gmra.mxu0 %v450
        %v905 = vpop.f32.mrf.mxu0
        %v906 = vadd.f32 %v323, %v905
        %907 = vmatmul.f32.gmra.mxu0 %v453
        %v908 = vpop.f32.mrf.mxu0
        %v909 = vadd.f32 %v323, %v908
        %910 = vmatmul.f32.gmra.mxu0 %v456
        %v911 = vpop.f32.mrf.mxu0
        %v912 = vadd.f32 %v323, %v911
        %913 = vmatmul.f32.gmra.mxu0 %v459
        %v914 = vpop.f32.mrf.mxu0
        %v915 = vadd.f32 %v323, %v914
        %916 = vmatmul.f32.gmra.mxu0 %v462
        %v917 = vpop.f32.mrf.mxu0
        %v918 = vadd.f32 %v323, %v917
        %919 = vmatmul.f32.gmra.mxu0 %v465
        %v920 = vpop.f32.mrf.mxu0
        %v921 = vadd.f32 %v323, %v920
        %922 = vmatmul.f32.gmra.mxu0 %v468
        %v923 = vpop.f32.mrf.mxu0
        %v924 = vadd.f32 %v323, %v923
        %925 = vmatmul.f32.gmra.mxu0 %v471
        %v926 = vpop.f32.mrf.mxu0
        %v927 = vadd.f32 %v323, %v926
        %928 = vmatmul.f32.gmra.mxu0 %v474
        %v929 = vpop.f32.mrf.mxu0
        %v930 = vadd.f32 %v323, %v929
        %931 = vmatmul.f32.gmra.mxu0 %v477
        %v932 = vpop.f32.mrf.mxu0
        %v933 = vadd.f32 %v323, %v932
        %934 = vmatmul.f32.gmra.mxu0 %v480
        %v935 = vpop.f32.mrf.mxu0
        %v936 = vadd.f32 %v323, %v935
        %937 = vmatmul.f32.gmra.mxu0 %v483
        %v938 = vpop.f32.mrf.mxu0
        %v939 = vadd.f32 %v323, %v938
        %940 = vmatmul.f32.gmra.mxu0 %v486
        %v941 = vpop.f32.mrf.mxu0
        %v942 = vadd.f32 %v323, %v941
        %943 = vmatmul.f32.gmra.mxu0 %v489
        %v944 = vpop.f32.mrf.mxu0
        %v945 = vadd.f32 %v323, %v944
        %946 = vmatmul.f32.gmra.mxu0 %v492
        %v947 = vpop.f32.mrf.mxu0
        %v948 = vadd.f32 %v323, %v947
        %949 = vmatmul.f32.gmra.mxu0 %v495
        %v950 = vpop.f32.mrf.mxu0
        %v951 = vadd.f32 %v323, %v950
        %952 = vmatmul.f32.gmra.mxu0 %v498
        %v953 = vpop.f32.mrf.mxu0
        %v954 = vadd.f32 %v323, %v953
        %955 = vmatmul.f32.gmra.mxu0 %v501
        %v956 = vpop.f32.mrf.mxu0
        %v957 = vadd.f32 %v323, %v956
        %958 = vmatmul.f32.gmra.mxu0 %v504
        %v959 = vpop.f32.mrf.mxu0
        %v960 = vadd.f32 %v323, %v959
        %961 = vmatmul.f32.gmra.mxu0 %v507
        %v962 = vpop.f32.mrf.mxu0
        %v963 = vadd.f32 %v323, %v962
        %964 = vmatmul.f32.gmra.mxu0 %v510
        %v965 = vpop.f32.mrf.mxu0
        %v966 = vadd.f32 %v323, %v965
        %967 = vmatmul.f32.gmra.mxu0 %v513
        %v968 = vpop.f32.mrf.mxu0
        %v969 = vadd.f32 %v323, %v968
        %970 = vmatmul.f32.gmra.mxu0 %v516
        %v971 = vpop.f32.mrf.mxu0
        %v972 = vadd.f32 %v323, %v971
        %973 = vmatmul.f32.gmra.mxu0 %v519
        %v974 = vpop.f32.mrf.mxu0
        %v975 = vadd.f32 %v323, %v974
        %976 = vmatmul.f32.gmra.mxu0 %v522
        %v977 = vpop.f32.mrf.mxu0
        %v978 = vadd.f32 %v323, %v977
        %979 = vmatmul.f32.gmra.mxu0 %v525
        %v980 = vpop.f32.mrf.mxu0
        %v981 = vadd.f32 %v323, %v980
        %982 = vmatmul.f32.gmra.mxu0 %v528
        %v983 = vpop.f32.mrf.mxu0
        %v984 = vadd.f32 %v323, %v983
        %985 = vmatmul.f32.gmra.mxu0 %v531
        %v986 = vpop.f32.mrf.mxu0
        %v987 = vadd.f32 %v323, %v986
        %988 = vmatmul.f32.gmra.mxu0 %v534
        %v989 = vpop.f32.mrf.mxu0
        %v990 = vadd.f32 %v323, %v989
        %991 = vmatmul.f32.gmra.mxu0 %v537
        %v992 = vpop.f32.mrf.mxu0
        %v993 = vadd.f32 %v323, %v992
        %994 = vmatmul.f32.gmra.mxu0 %v540
        %v995 = vpop.f32.mrf.mxu0
        %v996 = vadd.f32 %v323, %v995
        %997 = vmatmul.f32.gmra.mxu0 %v543
        %v998 = vpop.f32.mrf.mxu0
        %v999 = vadd.f32 %v323, %v998
        %1000 = vmatmul.f32.gmra.mxu0 %v546
        %v1001 = vpop.f32.mrf.mxu0
        %v1002 = vadd.f32 %v323, %v1001
        %1003 = vmatmul.f32.gmra.mxu0 %v549
        %v1004 = vpop.f32.mrf.mxu0
        %v1005 = vadd.f32 %v323, %v1004
        %1006 = vmatmul.f32.gmra.mxu0 %v552
        %v1007 = vpop.f32.mrf.mxu0
        %v1008 = vadd.f32 %v323, %v1007
        %1009 = vmatmul.f32.gmra.mxu0 %v555
        %v1010 = vpop.f32.mrf.mxu0
        %v1011 = vadd.f32 %v323, %v1010
        %1012 = vmatmul.f32.gmra.mxu0 %v558
        %v1013 = vpop.f32.mrf.mxu0
        %v1014 = vadd.f32 %v323, %v1013
        %1015 = vmatmul.f32.gmra.mxu0 %v561
        %v1016 = vpop.f32.mrf.mxu0
        %v1017 = vadd.f32 %v323, %v1016
        %1018 = vmatmul.f32.gmra.mxu0 %v564
        %v1019 = vpop.f32.mrf.mxu0
        %v1020 = vadd.f32 %v323, %v1019
        %1021 = vmatmul.f32.gmra.mxu0 %v567
        %v1022 = vpop.f32.mrf.mxu0
        %v1023 = vadd.f32 %v323, %v1022
        %1024 = vmatmul.f32.gmra.mxu0 %v570
        %v1025 = vpop.f32.mrf.mxu0
        %v1026 = vadd.f32 %v323, %v1025
        %1027 = vmatmul.f32.gmra.mxu0 %v573
        %v1028 = vpop.f32.mrf.mxu0
        %v1029 = vadd.f32 %v323, %v1028
        %1030 = vmatmul.f32.gmra.mxu0 %v576
        %v1031 = vpop.f32.mrf.mxu0
        %v1032 = vadd.f32 %v323, %v1031
        %1033 = vmatmul.f32.gmra.mxu0 %v579
        %v1034 = vpop.f32.mrf.mxu0
        %v1035 = vadd.f32 %v323, %v1034
        %1036 = vmatmul.f32.gmra.mxu0 %v582
        %v1037 = vpop.f32.mrf.mxu0
        %v1038 = vadd.f32 %v323, %v1037
        %1039 = vmatmul.f32.gmra.mxu0 %v585
        %v1040 = vpop.f32.mrf.mxu0
        %v1041 = vadd.f32 %v323, %v1040
        %1042 = vmatmul.f32.gmra.mxu0 %v588
        %v1043 = vpop.f32.mrf.mxu0
        %v1044 = vadd.f32 %v323, %v1043
        %1045 = vmatmul.f32.gmra.mxu0 %v591
        %v1046 = vpop.f32.mrf.mxu0
        %v1047 = vadd.f32 %v323, %v1046
        %1048 = vmatmul.f32.gmra.mxu0 %v594
        %v1049 = vpop.f32.mrf.mxu0
        %v1050 = vadd.f32 %v323, %v1049
        %1051 = vmatmul.f32.gmra.mxu0 %v597
        %v1052 = vpop.f32.mrf.mxu0
        %v1053 = vadd.f32 %v323, %v1052
        %1054 = vmatmul.f32.gmra.mxu0 %v600
        %v1055 = vpop.f32.mrf.mxu0
        %v1056 = vadd.f32 %v323, %v1055
        %1057 = vmatmul.f32.gmra.mxu0 %v603
        %v1058 = vpop.f32.mrf.mxu0
        %v1059 = vadd.f32 %v323, %v1058
        %1060 = vmatmul.f32.gmra.mxu0 %v606
        %v1061 = vpop.f32.mrf.mxu0
        %v1062 = vadd.f32 %v323, %v1061
        %1063 = vmatmul.f32.gmra.mxu0 %v609
        %v1064 = vpop.f32.mrf.mxu0
        %v1065 = vadd.f32 %v323, %v1064
        %1066 = vmatmul.f32.gmra.mxu0 %v612
        %v1067 = vpop.f32.mrf.mxu0
        %v1068 = vadd.f32 %v323, %v1067
        %1069 = vmatmul.f32.gmra.mxu0 %v615
        %v1070 = vpop.f32.mrf.mxu0
        %v1071 = vadd.f32 %v323, %v1070
        %1072 = vmatmul.f32.gmra.mxu0 %v618
        %v1073 = vpop.f32.mrf.mxu0
        %v1074 = vadd.f32 %v323, %v1073
        %1075 = vmatmul.f32.gmra.mxu0 %v621
        %v1076 = vpop.f32.mrf.mxu0
        %v1077 = vadd.f32 %v323, %v1076
        %1078 = vmatmul.f32.gmra.mxu0 %v624
        %v1079 = vpop.f32.mrf.mxu0
        %v1080 = vadd.f32 %v323, %v1079
        %1081 = vmatmul.f32.gmra.mxu0 %v627
        %v1082 = vpop.f32.mrf.mxu0
        %v1083 = vadd.f32 %v323, %v1082
        %1084 = vmatmul.f32.gmra.mxu0 %v630
        %v1085 = vpop.f32.mrf.mxu0
        %v1086 = vadd.f32 %v323, %v1085
        %1087 = vmatmul.f32.gmra.mxu0 %v633
        %v1088 = vpop.f32.mrf.mxu0
        %v1089 = vadd.f32 %v323, %v1088
        %1090 = vmatmul.f32.gmra.mxu0 %v636
        %v1091 = vpop.f32.mrf.mxu0
        %v1092 = vadd.f32 %v323, %v1091
        %1093 = vmatmul.f32.gmra.mxu0 %v639
        %v1094 = vpop.f32.mrf.mxu0
        %v1095 = vadd.f32 %v323, %v1094
        %1096 = vmatmul.f32.gmra.mxu0 %v642
        %v1097 = vpop.f32.mrf.mxu0
        %v1098 = vadd.f32 %v323, %v1097
        %1099 = vmatmul.f32.gmra.mxu0 %v645
        %v1100 = vpop.f32.mrf.mxu0
        %v1101 = vadd.f32 %v323, %v1100
        %1102 = vmatmul.f32.gmra.mxu0 %v648
        %v1103 = vpop.f32.mrf.mxu0
        %v1104 = vadd.f32 %v323, %v1103
        %1105 = vmatmul.f32.gmra.mxu0 %v651
        %v1106 = vpop.f32.mrf.mxu0
        %v1107 = vadd.f32 %v323, %v1106
        %1108 = vmatmul.f32.gmra.mxu0 %v654
        %v1109 = vpop.f32.mrf.mxu0
        %v1110 = vadd.f32 %v323, %v1109
        %1111 = vmatmul.f32.gmra.mxu0 %v657
        %v1112 = vpop.f32.mrf.mxu0
        %v1113 = vadd.f32 %v323, %v1112
        %1114 = vmatmul.f32.gmra.mxu0 %v660
        %v1115 = vpop.f32.mrf.mxu0
        %v1116 = vadd.f32 %v323, %v1115
        %1117 = vmatmul.f32.gmra.mxu0 %v663
        %v1118 = vpop.f32.mrf.mxu0
        %v1119 = vadd.f32 %v323, %v1118
        %1120 = vmatmul.f32.gmra.mxu0 %v666
        %v1121 = vpop.f32.mrf.mxu0
        %v1122 = vadd.f32 %v323, %v1121
        %1123 = vmatmul.f32.gmra.mxu0 %v669
        %v1124 = vpop.f32.mrf.mxu0
        %v1125 = vadd.f32 %v323, %v1124
        %1126 = vmatmul.f32.gmra.mxu0 %v672
        %v1127 = vpop.f32.mrf.mxu0
        %v1128 = vadd.f32 %v323, %v1127
        %1129 = vmatmul.f32.gmra.mxu0 %v675
        %v1130 = vpop.f32.mrf.mxu0
        %v1131 = vadd.f32 %v323, %v1130
        %1132 = vmatmul.f32.gmra.mxu0 %v678
        %v1133 = vpop.f32.mrf.mxu0
        %v1134 = vadd.f32 %v323, %v1133
        %1135 = vmatmul.f32.gmra.mxu0 %v681
        %v1136 = vpop.f32.mrf.mxu0
        %v1137 = vadd.f32 %v323, %v1136
        %1138 = vmatmul.f32.gmra.mxu0 %v684
        %v1139 = vpop.f32.mrf.mxu0
        %v1140 = vadd.f32 %v323, %v1139
        %1141 = vmatmul.f32.gmra.mxu0 %v687
        %v1142 = vpop.f32.mrf.mxu0
        %v1143 = vadd.f32 %v323, %v1142
        %1144 = vmatmul.f32.gmra.mxu0 %v690
        %v1145 = vpop.f32.mrf.mxu0
        %v1146 = vadd.f32 %v323, %v1145
        %1147 = vmatmul.f32.gmra.mxu0 %v693
        %v1148 = vpop.f32.mrf.mxu0
        %v1149 = vadd.f32 %v323, %v1148
        %1150 = vmatmul.f32.gmra.mxu0 %v696
        %v1151 = vpop.f32.mrf.mxu0
        %v1152 = vadd.f32 %v323, %v1151
        %1153 = vmatmul.f32.gmra.mxu0 %v699
        %v1154 = vpop.f32.mrf.mxu0
        %v1155 = vadd.f32 %v323, %v1154
        %1156 = vmatmul.f32.gmra.mxu0 %v702
        %v1157 = vpop.f32.mrf.mxu0
        %v1158 = vadd.f32 %v323, %v1157
        %1159 = vmatmul.f32.gmra.mxu0 %v705
        %v1160 = vpop.f32.mrf.mxu0
        %v1161 = vadd.f32 %v323, %v1160
        %1162 = vmatmul.f32.gmra.mxu0 %v708
        %v1163 = vpop.f32.mrf.mxu0
        %v1164 = vadd.f32 %v323, %v1163
        %1165 = vmatmul.f32.gmra.mxu0 %v711
        %v1166 = vpop.f32.mrf.mxu0
        %v1167 = vadd.f32 %v323, %v1166
        %1168 = vmatmul.f32.gmra.mxu0 %v714
        %v1169 = vpop.f32.mrf.mxu0
        %v1170 = vadd.f32 %v323, %v1169
        %1171 = vmatmul.f32.gmra.mxu0 %v717
        %v1172 = vpop.f32.mrf.mxu0
        %v1173 = vadd.f32 %v323, %v1172
        %1174 = vmatmul.f32.gmra.mxu0 %v720
        %v1175 = vpop.f32.mrf.mxu0
        %v1176 = vadd.f32 %v323, %v1175
        %1177 = vmatmul.f32.gmra.mxu0 %v723
        %v1178 = vpop.f32.mrf.mxu0
        %v1179 = vadd.f32 %v323, %v1178
        %1180 = vmatmul.f32.gmra.mxu0 %v726
        %v1181 = vpop.f32.mrf.mxu0
        %v1182 = vadd.f32 %v323, %v1181
        %1183 = vmatmul.f32.gmra.mxu0 %v729
        %v1184 = vpop.f32.mrf.mxu0
        %v1185 = vadd.f32 %v323, %v1184
        %1186 = vmatmul.f32.gmra.mxu0 %v732
        %v1187 = vpop.f32.mrf.mxu0
        %v1188 = vadd.f32 %v323, %v1187
        %1189 = vmatmul.f32.gmra.mxu0 %v735
        %v1190 = vpop.f32.mrf.mxu0
        %v1191 = vadd.f32 %v323, %v1190
        %1192 = vmatmul.f32.gmra.mxu0 %v738
        %v1193 = vpop.f32.mrf.mxu0
        %v1194 = vadd.f32 %v323, %v1193
        %1195 = vmatmul.f32.gmra.mxu0 %v741
        %v1196 = vpop.f32.mrf.mxu0
        %v1197 = vadd.f32 %v323, %v1196
        %1198 = vmatmul.f32.gmra.mxu0 %v744
        %v1199 = vpop.f32.mrf.mxu0
        %v1200 = vadd.f32 %v323, %v1199
        %1201 = vmatmul.f32.gmra.mxu0 %v747
        %v1202 = vpop.f32.mrf.mxu0
        %v1203 = vadd.f32 %v323, %v1202
        %1204 = vmatmul.f32.gmra.mxu0 %v750
        %v1205 = vpop.f32.mrf.mxu0
        %v1206 = vadd.f32 %v323, %v1205
        %1207 = vmatmul.f32.gmra.mxu0 %v753
        %v1208 = vpop.f32.mrf.mxu0
        %v1209 = vadd.f32 %v323, %v1208
        %1210 = vmatmul.f32.gmra.mxu0 %v756
        %v1211 = vpop.f32.mrf.mxu0
        %v1212 = vadd.f32 %v323, %v1211
        %1213 = vmatmul.f32.gmra.mxu0 %v759
        %v1214 = vpop.f32.mrf.mxu0
        %v1215 = vadd.f32 %v323, %v1214
        %1216 = vdwg.mxu0
        %v1217 = vmax.f32 %v783, 0.0
        %v1218 = vmax.f32 %v786, 0.0
        %v1219 = vmax.f32 %v789, 0.0
        %v1220 = vmax.f32 %v792, 0.0
        %v1221 = vmax.f32 %v795, 0.0
        %v1222 = vmax.f32 %v798, 0.0
        %v1223 = vmax.f32 %v801, 0.0
        %v1224 = vmax.f32 %v804, 0.0
        %v1225 = vmax.f32 %v807, 0.0
        %v1226 = vmax.f32 %v810, 0.0
        %v1227 = vmax.f32 %v813, 0.0
        %v1228 = vmax.f32 %v816, 0.0
        %v1229 = vmax.f32 %v819, 0.0
        %v1230 = vmax.f32 %v822, 0.0
        %v1231 = vmax.f32 %v825, 0.0
        %v1232 = vmax.f32 %v828, 0.0
        %v1233 = vmax.f32 %v831, 0.0
        %v1234 = vmax.f32 %v834, 0.0
        %v1235 = vmax.f32 %v837, 0.0
        %v1236 = vmax.f32 %v840, 0.0
        %v1237 = vmax.f32 %v843, 0.0
        %v1238 = vmax.f32 %v846, 0.0
        %v1239 = vmax.f32 %v849, 0.0
        %v1240 = vmax.f32 %v852, 0.0
        %v1241 = vmax.f32 %v855, 0.0
        %v1242 = vmax.f32 %v858, 0.0
        %v1243 = vmax.f32 %v861, 0.0
        %v1244 = vmax.f32 %v864, 0.0
        %v1245 = vmax.f32 %v867, 0.0
        %v1246 = vmax.f32 %v870, 0.0
        %v1247 = vmax.f32 %v873, 0.0
        %v1248 = vmax.f32 %v876, 0.0
        %v1249 = vmax.f32 %v879, 0.0
        %v1250 = vmax.f32 %v882, 0.0
        %v1251 = vmax.f32 %v885, 0.0
        %v1252 = vmax.f32 %v888, 0.0
        %v1253 = vmax.f32 %v891, 0.0
        %v1254 = vmax.f32 %v894, 0.0
        %v1255 = vmax.f32 %v897, 0.0
        %v1256 = vmax.f32 %v900, 0.0
        %v1257 = vmax.f32 %v903, 0.0
        %v1258 = vmax.f32 %v906, 0.0
        %v1259 = vmax.f32 %v909, 0.0
        %v1260 = vmax.f32 %v912, 0.0
        %v1261 = vmax.f32 %v915, 0.0
        %v1262 = vmax.f32 %v918, 0.0
        %v1263 = vmax.f32 %v921, 0.0
        %v1264 = vmax.f32 %v924, 0.0
        %v1265 = vmax.f32 %v927, 0.0
        %v1266 = vmax.f32 %v930, 0.0
        %v1267 = vmax.f32 %v933, 0.0
        %v1268 = vmax.f32 %v936, 0.0
        %v1269 = vmax.f32 %v939, 0.0
        %v1270 = vmax.f32 %v942, 0.0
        %v1271 = vmax.f32 %v945, 0.0
        %v1272 = vmax.f32 %v948, 0.0
        %v1273 = vmax.f32 %v951, 0.0
        %v1274 = vmax.f32 %v954, 0.0
        %v1275 = vmax.f32 %v957, 0.0
        %v1276 = vmax.f32 %v960, 0.0
        %v1277 = vmax.f32 %v963, 0.0
        %v1278 = vmax.f32 %v966, 0.0
        %v1279 = vmax.f32 %v969, 0.0
        %v1280 = vmax.f32 %v972, 0.0
        %v1281 = vmax.f32 %v975, 0.0
        %v1282 = vmax.f32 %v978, 0.0
        %v1283 = vmax.f32 %v981, 0.0
        %v1284 = vmax.f32 %v984, 0.0
        %v1285 = vmax.f32 %v987, 0.0
        %v1286 = vmax.f32 %v990, 0.0
        %v1287 = vmax.f32 %v993, 0.0
        %v1288 = vmax.f32 %v996, 0.0
        %v1289 = vmax.f32 %v999, 0.0
        %v1290 = vmax.f32 %v1002, 0.0
        %v1291 = vmax.f32 %v1005, 0.0
        %v1292 = vmax.f32 %v1008, 0.0
        %v1293 = vmax.f32 %v1011, 0.0
        %v1294 = vmax.f32 %v1014, 0.0
        %v1295 = vmax.f32 %v1017, 0.0
        %v1296 = vmax.f32 %v1020, 0.0
        %v1297 = vmax.f32 %v1023, 0.0
        %v1298 = vmax.f32 %v1026, 0.0
        %v1299 = vmax.f32 %v1029, 0.0
        %v1300 = vmax.f32 %v1032, 0.0
        %v1301 = vmax.f32 %v1035, 0.0
        %v1302 = vmax.f32 %v1038, 0.0
        %v1303 = vmax.f32 %v1041, 0.0
        %v1304 = vmax.f32 %v1044, 0.0
        %v1305 = vmax.f32 %v1047, 0.0
        %v1306 = vmax.f32 %v1050, 0.0
        %v1307 = vmax.f32 %v1053, 0.0
        %v1308 = vmax.f32 %v1056, 0.0
        %v1309 = vmax.f32 %v1059, 0.0
        %v1310 = vmax.f32 %v1062, 0.0
        %v1311 = vmax.f32 %v1065, 0.0
        %v1312 = vmax.f32 %v1068, 0.0
        %v1313 = vmax.f32 %v1071, 0.0
        %v1314 = vmax.f32 %v1074, 0.0
        %v1315 = vmax.f32 %v1077, 0.0
        %v1316 = vmax.f32 %v1080, 0.0
        %v1317 = vmax.f32 %v1083, 0.0
        %v1318 = vmax.f32 %v1086, 0.0
        %v1319 = vmax.f32 %v1089, 0.0
        %v1320 = vmax.f32 %v1092, 0.0
        %v1321 = vmax.f32 %v1095, 0.0
        %v1322 = vmax.f32 %v1098, 0.0
        %v1323 = vmax.f32 %v1101, 0.0
        %v1324 = vmax.f32 %v1104, 0.0
        %v1325 = vmax.f32 %v1107, 0.0
        %v1326 = vmax.f32 %v1110, 0.0
        %v1327 = vmax.f32 %v1113, 0.0
        %v1328 = vmax.f32 %v1116, 0.0
        %v1329 = vmax.f32 %v1119, 0.0
        %v1330 = vmax.f32 %v1122, 0.0
        %v1331 = vmax.f32 %v1125, 0.0
        %v1332 = vmax.f32 %v1128, 0.0
        %v1333 = vmax.f32 %v1131, 0.0
        %v1334 = vmax.f32 %v1134, 0.0
        %v1335 = vmax.f32 %v1137, 0.0
        %v1336 = vmax.f32 %v1140, 0.0
        %v1337 = vmax.f32 %v1143, 0.0
        %v1338 = vmax.f32 %v1146, 0.0
        %v1339 = vmax.f32 %v1149, 0.0
        %v1340 = vmax.f32 %v1152, 0.0
        %v1341 = vmax.f32 %v1155, 0.0
        %v1342 = vmax.f32 %v1158, 0.0
        %v1343 = vmax.f32 %v1161, 0.0
        %v1344 = vmax.f32 %v1164, 0.0
        %v1345 = vmax.f32 %v1167, 0.0
        %v1346 = vmax.f32 %v1170, 0.0
        %v1347 = vmax.f32 %v1173, 0.0
        %v1348 = vmax.f32 %v1176, 0.0
        %v1349 = vmax.f32 %v1179, 0.0
        %v1350 = vmax.f32 %v1182, 0.0
        %v1351 = vmax.f32 %v1185, 0.0
        %v1352 = vmax.f32 %v1188, 0.0
        %v1353 = vmax.f32 %v1191, 0.0
        %v1354 = vmax.f32 %v1194, 0.0
        %v1355 = vmax.f32 %v1197, 0.0
        %v1356 = vmax.f32 %v1200, 0.0
        %v1357 = vmax.f32 %v1203, 0.0
        %v1358 = vmax.f32 %v1206, 0.0
        %v1359 = vmax.f32 %v1209, 0.0
        %v1360 = vmax.f32 %v1212, 0.0
        %v1361 = vmax.f32 %v1215, 0.0
        %1362 = vst [vmem:[%s164] sm:$0xff] %v1217
        %1363 = vst [vmem:[%s164 + $0x8] sm:$0xff] %v1218
        %1364 = vst [vmem:[%s164 + $0x10] sm:$0xff] %v1219
        %1365 = vst [vmem:[%s164 + $0x18] sm:$0xff] %v1220
        %1366 = vst [vmem:[%s164 + $0x20] sm:$0xff] %v1221
        %1367 = vst [vmem:[%s164 + $0x28] sm:$0xff] %v1222
        %1368 = vst [vmem:[%s164 + $0x30] sm:$0xff] %v1223
        %1369 = vst [vmem:[%s164 + $0x38] sm:$0xff] %v1224
        %1370 = vst [vmem:[%s164 + $0x40] sm:$0xff] %v1225
        %1371 = vst [vmem:[%s164 + $0x48] sm:$0xff] %v1226
        %1372 = vst [vmem:[%s164 + $0x50] sm:$0xff] %v1227
        %1373 = vst [vmem:[%s164 + $0x58] sm:$0xff] %v1228
        %1374 = vst [vmem:[%s164 + $0x60] sm:$0xff] %v1229
        %1375 = vst [vmem:[%s164 + $0x68] sm:$0xff] %v1230
        %1376 = vst [vmem:[%s164 + $0x70] sm:$0xff] %v1231
        %1377 = vst [vmem:[%s164 + $0x78] sm:$0xff] %v1232
        %1378 = vst [vmem:[%s164 + $0x80] sm:$0xff] %v1233
        %1379 = vst [vmem:[%s164 + $0x88] sm:$0xff] %v1234
        %1380 = vst [vmem:[%s164 + $0x90] sm:$0xff] %v1235
        %1381 = vst [vmem:[%s164 + $0x98] sm:$0xff] %v1236
        %1382 = vst [vmem:[%s164 + $0xa0] sm:$0xff] %v1237
        %1383 = vst [vmem:[%s164 + $0xa8] sm:$0xff] %v1238
        %1384 = vst [vmem:[%s164 + $0xb0] sm:$0xff] %v1239
        %1385 = vst [vmem:[%s164 + $0xb8] sm:$0xff] %v1240
        %1386 = vst [vmem:[%s164 + $0xc0] sm:$0xff] %v1241
        %1387 = vst [vmem:[%s164 + $0xc8] sm:$0xff] %v1242
        %1388 = vst [vmem:[%s164 + $0xd0] sm:$0xff] %v1243
        %1389 = vst [vmem:[%s164 + $0xd8] sm:$0xff] %v1244
        %1390 = vst [vmem:[%s164 + $0xe0] sm:$0xff] %v1245
        %1391 = vst [vmem:[%s164 + $0xe8] sm:$0xff] %v1246
        %1392 = vst [vmem:[%s164 + $0xf0] sm:$0xff] %v1247
        %1393 = vst [vmem:[%s164 + $0xf8] sm:$0xff] %v1248
        %1394 = vst [vmem:[%s164 + $0x100] sm:$0xff] %v1249
        %1395 = vst [vmem:[%s164 + $0x108] sm:$0xff] %v1250
        %1396 = vst [vmem:[%s164 + $0x110] sm:$0xff] %v1251
        %1397 = vst [vmem:[%s164 + $0x118] sm:$0xff] %v1252
        %1398 = vst [vmem:[%s164 + $0x120] sm:$0xff] %v1253
        %1399 = vst [vmem:[%s164 + $0x128] sm:$0xff] %v1254
        %1400 = vst [vmem:[%s164 + $0x130] sm:$0xff] %v1255
        %1401 = vst [vmem:[%s164 + $0x138] sm:$0xff] %v1256
        %1402 = vst [vmem:[%s164 + $0x140] sm:$0xff] %v1257
        %1403 = vst [vmem:[%s164 + $0x148] sm:$0xff] %v1258
        %1404 = vst [vmem:[%s164 + $0x150] sm:$0xff] %v1259
        %1405 = vst [vmem:[%s164 + $0x158] sm:$0xff] %v1260
        %1406 = vst [vmem:[%s164 + $0x160] sm:$0xff] %v1261
        %1407 = vst [vmem:[%s164 + $0x168] sm:$0xff] %v1262
        %1408 = vst [vmem:[%s164 + $0x170] sm:$0xff] %v1263
        %1409 = vst [vmem:[%s164 + $0x178] sm:$0xff] %v1264
        %1410 = vst [vmem:[%s164 + $0x180] sm:$0xff] %v1265
        %1411 = vst [vmem:[%s164 + $0x188] sm:$0xff] %v1266
        %1412 = vst [vmem:[%s164 + $0x190] sm:$0xff] %v1267
        %1413 = vst [vmem:[%s164 + $0x198] sm:$0xff] %v1268
        %1414 = vst [vmem:[%s164 + $0x1a0] sm:$0xff] %v1269
        %1415 = vst [vmem:[%s164 + $0x1a8] sm:$0xff] %v1270
        %1416 = vst [vmem:[%s164 + $0x1b0] sm:$0xff] %v1271
        %1417 = vst [vmem:[%s164 + $0x1b8] sm:$0xff] %v1272
        %1418 = vst [vmem:[%s164 + $0x1c0] sm:$0xff] %v1273
        %1419 = vst [vmem:[%s164 + $0x1c8] sm:$0xff] %v1274
        %1420 = vst [vmem:[%s164 + $0x1d0] sm:$0xff] %v1275
        %1421 = vst [vmem:[%s164 + $0x1d8] sm:$0xff] %v1276
        %1422 = vst [vmem:[%s164 + $0x1e0] sm:$0xff] %v1277
        %1423 = vst [vmem:[%s164 + $0x1e8] sm:$0xff] %v1278
        %1424 = vst [vmem:[%s164 + $0x1f0] sm:$0xff] %v1279
        %1425 = vst [vmem:[%s164 + $0x1f8] sm:$0xff] %v1280
        %1426 = vst [vmem:[%s164 + $0x200] sm:$0xff] %v1281
        %1427 = vst [vmem:[%s164 + $0x208] sm:$0xff] %v1282
        %1428 = vst [vmem:[%s164 + $0x210] sm:$0xff] %v1283
        %1429 = vst [vmem:[%s164 + $0x218] sm:$0xff] %v1284
        %1430 = vst [vmem:[%s164 + $0x220] sm:$0xff] %v1285
        %1431 = vst [vmem:[%s164 + $0x228] sm:$0xff] %v1286
        %1432 = vst [vmem:[%s164 + $0x230] sm:$0xff] %v1287
        %1433 = vst [vmem:[%s164 + $0x238] sm:$0xff] %v1288
        %1434 = vst [vmem:[%s164 + $0x240] sm:$0xff] %v1289
        %1435 = vst [vmem:[%s164 + $0x248] sm:$0xff] %v1290
        %1436 = vst [vmem:[%s164 + $0x250] sm:$0xff] %v1291
        %1437 = vst [vmem:[%s164 + $0x258] sm:$0xff] %v1292
        %1438 = vst [vmem:[%s164 + $0x260] sm:$0xff] %v1293
        %1439 = vst [vmem:[%s164 + $0x268] sm:$0xff] %v1294
        %1440 = vst [vmem:[%s164 + $0x270] sm:$0xff] %v1295
        %1441 = vst [vmem:[%s164 + $0x278] sm:$0xff] %v1296
        %1442 = vst [vmem:[%s164 + $0x280] sm:$0xff] %v1297
        %1443 = vst [vmem:[%s164 + $0x288] sm:$0xff] %v1298
        %1444 = vst [vmem:[%s164 + $0x290] sm:$0xff] %v1299
        %1445 = vst [vmem:[%s164 + $0x298] sm:$0xff] %v1300
        %1446 = vst [vmem:[%s164 + $0x2a0] sm:$0xff] %v1301
        %1447 = vst [vmem:[%s164 + $0x2a8] sm:$0xff] %v1302
        %1448 = vst [vmem:[%s164 + $0x2b0] sm:$0xff] %v1303
        %1449 = vst [vmem:[%s164 + $0x2b8] sm:$0xff] %v1304
        %1450 = vst [vmem:[%s164 + $0x2c0] sm:$0xff] %v1305
        %1451 = vst [vmem:[%s164 + $0x2c8] sm:$0xff] %v1306
        %1452 = vst [vmem:[%s164 + $0x2d0] sm:$0xff] %v1307
        %1453 = vst [vmem:[%s164 + $0x2d8] sm:$0xff] %v1308
        %1454 = vst [vmem:[%s164 + $0x2e0] sm:$0xff] %v1309
        %1455 = vst [vmem:[%s164 + $0x2e8] sm:$0xff] %v1310
        %1456 = vst [vmem:[%s164 + $0x2f0] sm:$0xff] %v1311
        %1457 = vst [vmem:[%s164 + $0x2f8] sm:$0xff] %v1312
        %1458 = vst [vmem:[%s164 + $0x300] sm:$0xff] %v1313
        %1459 = vst [vmem:[%s164 + $0x308] sm:$0xff] %v1314
        %1460 = vst [vmem:[%s164 + $0x310] sm:$0xff] %v1315
        %1461 = vst [vmem:[%s164 + $0x318] sm:$0xff] %v1316
        %1462 = vst [vmem:[%s164 + $0x320] sm:$0xff] %v1317
        %1463 = vst [vmem:[%s164 + $0x328] sm:$0xff] %v1318
        %1464 = vst [vmem:[%s164 + $0x330] sm:$0xff] %v1319
        %1465 = vst [vmem:[%s164 + $0x338] sm:$0xff] %v1320
        %1466 = vst [vmem:[%s164 + $0x340] sm:$0xff] %v1321
        %1467 = vst [vmem:[%s164 + $0x348] sm:$0xff] %v1322
        %1468 = vst [vmem:[%s164 + $0x350] sm:$0xff] %v1323
        %1469 = vst [vmem:[%s164 + $0x358] sm:$0xff] %v1324
        %1470 = vst [vmem:[%s164 + $0x360] sm:$0xff] %v1325
        %1471 = vst [vmem:[%s164 + $0x368] sm:$0xff] %v1326
        %1472 = vst [vmem:[%s164 + $0x370] sm:$0xff] %v1327
        %1473 = vst [vmem:[%s164 + $0x378] sm:$0xff] %v1328
        %1474 = vst [vmem:[%s164 + $0x380] sm:$0xff] %v1329
        %1475 = vst [vmem:[%s164 + $0x388] sm:$0xff] %v1330
        %1476 = vst [vmem:[%s164 + $0x390] sm:$0xff] %v1331
        %1477 = vst [vmem:[%s164 + $0x398] sm:$0xff] %v1332
        %1478 = vst [vmem:[%s164 + $0x3a0] sm:$0xff] %v1333
        %1479 = vst [vmem:[%s164 + $0x3a8] sm:$0xff] %v1334
        %1480 = vst [vmem:[%s164 + $0x3b0] sm:$0xff] %v1335
        %1481 = vst [vmem:[%s164 + $0x3b8] sm:$0xff] %v1336
        %1482 = vst [vmem:[%s164 + $0x3c0] sm:$0xff] %v1337
        %1483 = vst [vmem:[%s164 + $0x3c8] sm:$0xff] %v1338
        %1484 = vst [vmem:[%s164 + $0x3d0] sm:$0xff] %v1339
        %1485 = vst [vmem:[%s164 + $0x3d8] sm:$0xff] %v1340
        %1486 = vst [vmem:[%s164 + $0x3e0] sm:$0xff] %v1341
        %1487 = vst [vmem:[%s164 + $0x3e8] sm:$0xff] %v1342
        %1488 = vst [vmem:[%s164 + $0x3f0] sm:$0xff] %v1343
        %1489 = vst [vmem:[%s164 + $0x3f8] sm:$0xff] %v1344
        %1490 = vst [vmem:[%s164 + $0x400] sm:$0xff] %v1345
        %1491 = vst [vmem:[%s164 + $0x408] sm:$0xff] %v1346
        %1492 = vst [vmem:[%s164 + $0x410] sm:$0xff] %v1347
        %1493 = vst [vmem:[%s164 + $0x418] sm:$0xff] %v1348
        %1494 = vst [vmem:[%s164 + $0x420] sm:$0xff] %v1349
        %1495 = vst [vmem:[%s164 + $0x428] sm:$0xff] %v1350
        %1496 = vst [vmem:[%s164 + $0x430] sm:$0xff] %v1351
        %1497 = vst [vmem:[%s164 + $0x438] sm:$0xff] %v1352
        %1498 = vst [vmem:[%s164 + $0x440] sm:$0xff] %v1353
        %1499 = vst [vmem:[%s164 + $0x448] sm:$0xff] %v1354
        %1500 = vst [vmem:[%s164 + $0x450] sm:$0xff] %v1355
        %1501 = vst [vmem:[%s164 + $0x458] sm:$0xff] %v1356
        %1502 = vst [vmem:[%s164 + $0x460] sm:$0xff] %v1357
        %1503 = vst [vmem:[%s164 + $0x468] sm:$0xff] %v1358
        %1504 = vst [vmem:[%s164 + $0x470] sm:$0xff] %v1359
        %1505 = vst [vmem:[%s164 + $0x478] sm:$0xff] %v1360
        %1506 = vst [vmem:[%s164 + $0x480] sm:$0xff] %v1361
        %s1507 = sand.u32 %s93, 1
        %s1508 = scalar_lea.sflag [#allocation3], %s1507
        %s1509 = sand.u32 %s93, 1
        %s1510 = smul.addr %s1509, 1160
        %s1511 = scalar_lea.vmem [#allocation2], %s1510
        // Predicated region
        $region33: #{tpu_custom_call.1} parent=31 // pred_check
          %p1512 = pneg %p103
        $region34: #{tpu_custom_call.1} parent=31 // pred_check_branch
          %1514 = sbr.rel (%p1512) target = $region36
        $region35: #{tpu_custom_call.1} parent=31 // pred_region
          %s1515 = smul.u32 145, %s17
          %1517 = vsyncadd %s1508, 0
          %s1518 = smul.addr %s1515, 8
          %s1519 = scalar_lea.hbm %s3, %s1518
          %s1520 = sshll.u32 %s1511, 4
          %s1521 = int_to_ptr.vmem [resolvable:$true] %s1520
          %s1522 = sshll.u32 %s1519, 4
          %s1523 = int_to_ptr.hbm [resolvable:$true] %s1522
          %1528 = dma.vmem_to_hbm [thread:$0]  %s1521, 18560, %s1523, %s1508, 128, 128, 8
        $region36: #{tpu_custom_call.1} parent=31 // pred_fallthru
          _
      $region32: #{tpu_custom_call.1} parent=5 // pred_fallthru
        _
      %p1529 = scmp.le.s32.totalorder 2, %s12
      // Predicated region
      $region37: #{tpu_custom_call.1} parent=5 // pred_check
        %p1530 = pneg %p1529
      $region38: #{tpu_custom_call.1} parent=5 // pred_check_branch
        %1532 = sbr.rel (%p1530) target = $region40
      $region39: #{tpu_custom_call.1} parent=5 // pred_region
        %s1533 = ssub.s32 %s12, 2
        // Predicated region
        $region41: #{tpu_custom_call.1} parent=39 // pred_check
          %p1534 = pneg %p109
        $region42: #{tpu_custom_call.1} parent=39 // pred_check_branch
          %1536 = sbr.rel (%p1534) target = $region44
        $region43: #{tpu_custom_call.1} parent=39 // pred_region
          %s1537 = sand.u32 %s94, 1
          %s1538 = scalar_lea.sflag [#allocation3], %s1537
          %s1539 = sand.u32 %s94, 1
          %s1540 = smul.addr %s1539, 1160
          %s1541 = scalar_lea.vmem [#allocation2], %s1540
          %1543 = dma.done %s1538, 18560
        $region44: #{tpu_custom_call.1} parent=39 // pred_fallthru
          _
      $region40: #{tpu_custom_call.1} parent=5 // pred_fallthru
        _
    $region6: #{tpu_custom_call.1} parent=1 // loop_footer
      %s16 = sadd.s32 1, %s12
    $region7: #{tpu_custom_call.1} parent=1 // loop_footer_branch
      %11 = sbr.rel target = $region3
    $region8: #{tpu_custom_call.1} parent=1 // loop_exit
      _
    %1544 = vsyncpa [#allocation3], 1
    %s1545 = scalar_lea.sflag [#allocation3], 1
    %1546 = vsyncpa %s1545, 1

</llo_original>
